<compile_context>
chip_gen: v5e
topology: v5e:2x2
jax: 0.10.0
libtpu: 0.0.40
codegen_flags: <defaults>
</compile_context>

<pallas_src>
import functools
import math

import jax
import jax.numpy as jnp
from jax import lax
from jax.experimental import pallas as pl
from jax.experimental.pallas import tpu as pltpu


# --------------------------------------------------------------------------- #
# Kernel
# --------------------------------------------------------------------------- #
def _flash_qkv_kernel(q_ref, k_ref, v_ref, o_ref, qt_sc, m_sc, l_sc, acc_sc, *,
                      scale_sq, hb, ch, exp_dtype):
    """One (batch, head-group, q-tile, kv-tile) grid step.

    q_ref: [1, hb*ch, tq]   k_ref/v_ref: [1, hb*ch, tkv]   o_ref: [1, hb*ch, tq]
    qt_sc: [hb, tq, ch] (input dtype)  -- scaled, transposed q staged at ki==0
    m_sc/l_sc: [hb, tq, 1] f32         acc_sc: [hb, tq, ch] f32
    NOTE: correctness relies on the kv axis being the innermost grid axis.
    """
    ki = pl.program_id(3)
    tq = q_ref.shape[2]
    tkv = k_ref.shape[2]

    @pl.when(ki == 0)
    def _init():
        m_sc[...] = jnp.full_like(m_sc, -jnp.inf)
        l_sc[...] = jnp.zeros_like(l_sc)
        acc_sc[...] = jnp.zeros_like(acc_sc)
        # Stage q once per q tile: apply scale^2 (== 1/sqrt(ch)) and transpose
        # to [hb, tq, ch] so the per-kv-step score matmul is a native
        # [M,K]x[K,N] contraction (no per-step relayout / VALU multiplies).
        q = (q_ref[0] * scale_sq).reshape(hb, ch, tq)
        qt_sc[...] = jnp.swapaxes(q, 1, 2).astype(qt_sc.dtype)

    q_t = qt_sc[...]                                   # [hb, tq, ch]
    k = k_ref[0].reshape(hb, ch, tkv)                  # [hb, ch, tkv]
    v = v_ref[0].reshape(hb, ch, tkv)                  # [hb, ch, tkv]

    # s[h, t, s'] = sum_c q_t[h, t, c] * k[h, c, s']
    s = lax.dot_general(q_t, k, (((2,), (1,)), ((0,), (0,))),
                        preferred_element_type=jnp.float32)   # [hb, tq, tkv]

    m_prev = m_sc[...]
    m_new = jnp.maximum(m_prev, jnp.max(s, axis=-1, keepdims=True))
    alpha = jnp.exp(m_prev - m_new)                           # [hb, tq, 1] f32
    # exp in bf16 only on chips whose EUP has a bf16 path (decided in wrapper);
    # the row-sum / m / l bookkeeping stays in f32.
    p = jnp.exp((s - m_new).astype(exp_dtype))                # [hb, tq, tkv]
    l_sc[...] = alpha * l_sc[...] + jnp.sum(
        p.astype(jnp.float32), axis=-1, keepdims=True)
    # NOTE: if a profile ever shows the XLU saturated, this row-sum can be
    # offloaded to the MXU via a ones-vector dot; left on the XLU by default.

    # pv[h, t, c] = sum_s' p[h, t, s'] * v[h, c, s']  (weights cast to the
    # input dtype, matching PyTorch's post-softmax cast; f32 MXU accumulation)
    pv = lax.dot_general(p.astype(v.dtype), v, (((2,), (2,)), ((0,), (0,))),
                         preferred_element_type=jnp.float32)  # [hb, tq, ch]
    acc_sc[...] = alpha * acc_sc[...] + pv
    m_sc[...] = m_new

    @pl.when(ki == pl.num_programs(3) - 1)
    def _finalize():
        l = l_sc[...]
        inv = pl.reciprocal(l, approx=True)          # EUP reciprocal
        inv = inv * (2.0 - l * inv)                  # one Newton step -> ~exact
        # Cast first, transpose second: for bf16 outputs the XLU then moves
        # half the vregs; free for f32.
        out = (acc_sc[...] * inv).astype(o_ref.dtype)   # [hb, tq, ch]
        out = jnp.swapaxes(out, 1, 2)                   # [hb, ch, tq]
        o_ref[0] = out.reshape(hb * ch, tq)


# --------------------------------------------------------------------------- #
# Generation-aware tiling heuristics
# --------------------------------------------------------------------------- #
def _tpu_generation():
    """Coarse chip generation: 'v5', 'v6', 'v7' or None if unknown."""
    try:
        kind = jax.devices()[0].device_kind.lower()
    except Exception:
        return None
    for g in ("v7", "v6", "v5"):
        if g in kind:
            return g
    return None


def _vmem_capacity_bytes(gen):
    """Physical per-core VMEM, via get_tpu_info when available."""
    try:
        info = pltpu.get_tpu_info()
        cap = int(getattr(info, "vmem_capacity_bytes", 0) or 0)
        if cap:
            return min(max(cap, 32 * 1024 * 1024), 256 * 1024 * 1024)
    except Exception:
        pass
    if gen in ("v5", "v6"):
        return 128 * 1024 * 1024
    # v7x has 64 MiB per TC; also the safe default when unknown.
    return 64 * 1024 * 1024


def _lane_pad(n):
    return ((n + 127) // 128) * 128


def _footprint(hb, ch, tq, tkv, itemsize):
    """Per-grid-step VMEM bytes (double-buffered blocks + scratch + temps)."""
    io = 2 * hb * ch * (tq + 2 * tkv) * itemsize      # double-buffered q, k, v
    io += 2 * hb * ch * tq * itemsize                 # double-buffered output
    ch_pad = _lane_pad(ch)
    # acc (lane-padded ch) + m/l (trailing dim 1 -> padded to 128 lanes), f32
    scratch = hb * tq * (ch_pad + 2 * 128) * 4
    scratch += hb * tq * ch_pad * itemsize            # staged q^T scratch
    inter = 3 * hb * tq * _lane_pad(tkv) * 4          # s, p and exp temporaries
    return io + scratch + inter


def _pick_seq_tile(length, target):
    """Largest divisor of `length` that is a multiple of 128 and <= target;
    falls back to the full length (block dims must be 128-multiples or full)."""
    if length <= target:
        return length
    d = (target // 128) * 128
    while d >= 128:
        if length % d == 0:
            return d
        d -= 128
    return length


def _auto_tiles(bs, n_heads, ch, length, itemsize, budget, gen):
    """Pick (tq, tkv, hb).  Priority: tq first (K/V HBM re-streaming ~ T/tq),
    then head block, then bump tkv with leftover VMEM."""
    tkv = _pick_seq_tile(length, 512)

    # q-tile candidates: divisors of length that are 128-multiples, plus length.
    cands = {length}
    d = 128
    while d < length:
        if length % d == 0:
            cands.add(d)
        d += 128
    cands = sorted(cands, reverse=True)
    tq = cands[-1]
    for c in cands:
        if _footprint(1, ch, c, tkv, itemsize) <= budget:
            tq = c
            break

    # Head block second: largest divisor of n_heads that still fits.
    hb = 1
    for d in sorted((x for x in range(1, n_heads + 1) if n_heads % x == 0),
                    reverse=True):
        if _footprint(d, ch, tq, tkv, itemsize) <= budget:
            hb = d
            break

    # Spend leftover VMEM on a bigger kv tile (fewer grid steps / bigger MXU N).
    while (tkv * 2 <= min(length, 2048) and length % (tkv * 2) == 0
           and _footprint(hb, ch, tq, tkv * 2, itemsize) <= budget):
        tkv *= 2

    # v7x: 2 TensorCores share the chip -- make sure the parallel grid extent
    # (bs * head_groups * q_tiles) covers both cores; shrink hb to raise G.
    if gen == "v7":
        while bs * (n_heads // hb) * (length // tq) < 2 and hb > 1:
            divs = [x for x in range(1, hb) if n_heads % x == 0]
            hb = max(divs) if divs else 1

    return tq, tkv, hb


# --------------------------------------------------------------------------- #
# Wrapper
# --------------------------------------------------------------------------- #
def qkv_attention(qkv, n_heads, *, head_block=None, q_tile=None, kv_tile=None):
    """qkv: [N, 3*H*C, T]  ->  [N, H*C, T]  (same semantics as QKVAttention)."""
    bs, width, length = qkv.shape
    assert width % (3 * n_heads) == 0
    ch = width // (3 * n_heads)
    scale = 1.0 / math.sqrt(math.sqrt(ch))
    scale_sq = scale * scale                       # applied once to q
    itemsize = qkv.dtype.itemsize

    gen = _tpu_generation()
    vmem_cap = _vmem_capacity_bytes(gen)
    vmem_limit = (3 * vmem_cap) // 4               # 96 MiB on 128 MiB parts, 48 MiB on v7x
    budget = (7 * vmem_limit) // 10                # tile budget w/ Mosaic headroom

    a_tq, a_tkv, a_hb = _auto_tiles(bs, n_heads, ch, length, itemsize, budget, gen)
    tq = q_tile if q_tile is not None else a_tq
    tkv = kv_tile if kv_tile is not None else a_tkv
    hb = head_block if head_block is not None else a_hb
    assert length % tq == 0 and length % tkv == 0 and n_heads % hb == 0

    # The in-kernel reshape [hb*ch, t] -> [hb, ch, t] is only layout-free when
    # ch splits cleanly off the sublane axis; otherwise keep one head / block.
    sublane = max(1, 32 // itemsize)
    if (ch % sublane) and head_block is None:
        hb = 1

    G = n_heads // hb
    grid = (bs, G, length // tq, length // tkv)    # kv axis MUST stay innermost

    # bf16 exp only where the EUP has a bf16 path (v6e/v7x); v5e stays f32.
    exp_dtype = (jnp.bfloat16
                 if (qkv.dtype == jnp.bfloat16 and gen in ("v6", "v7"))
                 else jnp.float32)

    # Channel-block indices into the packed [N, 3*H*C, T] tensor
    # (block size along channels is hb*ch; q region starts at block 0,
    #  k region at block G, v region at block 2*G).
    def q_map(n, g, qi, ki):
        return (n, g, qi)

    def k_map(n, g, qi, ki):
        return (n, G + g, ki)

    def v_map(n, g, qi, ki):
        return (n, 2 * G + g, ki)

    def o_map(n, g, qi, ki):
        return (n, g, qi)

    kernel = functools.partial(_flash_qkv_kernel, scale_sq=scale_sq,
                               hb=hb, ch=ch, exp_dtype=exp_dtype)

    # TODO(synk): on v5e, if a profile shows exposed per-step K/V DMA even with
    # the larger tq, add pipeline_mode=pl.Buffered(3) to the k/v BlockSpecs.
    out = pl.pallas_call(
        kernel,
        out_shape=jax.ShapeDtypeStruct((bs, n_heads * ch, length), qkv.dtype),
        grid_spec=pltpu.PrefetchScalarGridSpec(
            num_scalar_prefetch=0,
            grid=grid,
            in_specs=[
                pl.BlockSpec((1, hb * ch, tq), q_map),
                pl.BlockSpec((1, hb * ch, tkv), k_map),
                pl.BlockSpec((1, hb * ch, tkv), v_map),
            ],
            out_specs=pl.BlockSpec((1, hb * ch, tq), o_map),
            scratch_shapes=[
                pltpu.VMEM((hb, tq, ch), qkv.dtype),     # staged q^T (scaled)
                pltpu.VMEM((hb, tq, 1), jnp.float32),    # running max m
                pltpu.VMEM((hb, tq, 1), jnp.float32),    # running sum l
                pltpu.VMEM((hb, tq, ch), jnp.float32),   # output accumulator
            ],
        ),
        compiler_params=pltpu.CompilerParams(
            dimension_semantics=("parallel", "parallel", "parallel", "arbitrary"),
            vmem_limit_bytes=int(vmem_limit),
        ),
    )(qkv, qkv, qkv)   # same HBM buffer, three different tile windows

    return out


# --------------------------------------------------------------------------- #
# Reference + smoke tests
# --------------------------------------------------------------------------- #
def _reference(qkv, n_heads):
    """Pure-JAX port of the PyTorch forward (including dtype casts)."""
    bs, width, length = qkv.shape
    ch = width // (3 * n_heads)
    q, k, v = jnp.split(qkv, 3, axis=1)
    scale = 1.0 / math.sqrt(math.sqrt(ch))
    q = (q * scale).reshape(bs * n_heads, ch, length)
    k = (k * scale).reshape(bs * n_heads, ch, length)
    v = v.reshape(bs * n_heads, ch, length)
    w = jnp.einsum("bct,bcs->bts", q, k)
    w = jax.nn.softmax(w.astype(jnp.float32), axis=-1).astype(qkv.dtype)
    a = jnp.einsum("bts,bcs->bct", w, v)
    return a.reshape(bs, -1, length)


if __name__ == "__main__":
    key = jax.random.PRNGKey(0)
    k1, k2 = jax.random.split(key)

    # Config A: tiny smoke test (N=2, H=2, C=8, T=16) with auto tiling.
    N, H, C, T = 2, 2, 8, 16
    qkv_a = jax.random.normal(k1, (N, 3 * H * C, T), dtype=jnp.float32)
    out_a = jax.block_until_ready(qkv_attention(qkv_a, n_heads=H))
    ref_a = _reference(qkv_a, H)
    assert out_a.shape == (N, H * C, T)
    assert jnp.allclose(out_a, ref_a, atol=1e-3, rtol=1e-3)

    # Config B: exercises head-group indexing (G > 1), 128-lane tiles and the
    # multi-step online-softmax accumulation across the KV grid axis.
    N, H, C, T = 1, 2, 8, 256
    qkv_b = jax.random.normal(k2, (N, 3 * H * C, T), dtype=jnp.float32)
    out_b = jax.block_until_ready(
        qkv_attention(qkv_b, n_heads=H, head_block=1, q_tile=128, kv_tile=128))
    ref_b = _reference(qkv_b, H)
    assert out_b.shape == (N, H * C, T)
    assert jnp.allclose(out_b, ref_b, atol=1e-3, rtol=1e-3)

    print("KERNEL_OK")
</pallas_src>

<mosaic_0001>
module attributes {stable_mosaic.version = 11 : i64} {
  func.func @_flash_qkv_kernel(%arg0: i32, %arg1: i32, %arg2: i32, %arg3: i32, %arg4: memref<1x16x16xf32, #tpu.memory_space<vmem>>, %arg5: memref<1x16x16xf32, #tpu.memory_space<vmem>>, %arg6: memref<1x16x16xf32, #tpu.memory_space<vmem>>, %arg7: memref<1x16x16xf32, #tpu.memory_space<vmem>>, %arg8: memref<2x16x8xf32, #tpu.memory_space<vmem>>, %arg9: memref<2x16x1xf32, #tpu.memory_space<vmem>>, %arg10: memref<2x16x1xf32, #tpu.memory_space<vmem>>, %arg11: memref<2x16x8xf32, #tpu.memory_space<vmem>>) attributes {dimension_semantics = [#tpu.dimension_semantics<parallel>, #tpu.dimension_semantics<parallel>, #tpu.dimension_semantics<parallel>, #tpu.dimension_semantics<arbitrary>], iteration_bounds = array<i64: 2, 1, 1, 1>, scalar_prefetch = 0 : i64, scratch_operands = 4 : i64, tpu.core_type = #tpu.core_type<tc>, window_params = [{transform_indices = @transform_0, window_bounds = array<i64: 1, 16, 16>}, {transform_indices = @transform_1, window_bounds = array<i64: 1, 16, 16>}, {transform_indices = @transform_2, window_bounds = array<i64: 1, 16, 16>}, {transform_indices = @transform_3, window_bounds = array<i64: 1, 16, 16>}]} {
    %c0_i32 = arith.constant 0 : i32
    %0 = arith.cmpi eq, %arg3, %c0_i32 : i32
    %1 = arith.extui %0 : i1 to i32
    %c0_i32_0 = arith.constant 0 : i32
    %2 = arith.cmpi ne, %1, %c0_i32_0 : i32
    scf.if %2 {
      %cst_32 = arith.constant 0xFF800000 : f32
      %36 = vector.broadcast %cst_32 : f32 to vector<2x16x1xf32>
      %c0_33 = arith.constant 0 : index
      %c0_34 = arith.constant 0 : index
      %c0_35 = arith.constant 0 : index
      %37 = vector.load %arg9[%c0_33, %c0_34, %c0_35] : memref<2x16x1xf32, #tpu.memory_space<vmem>>, vector<2x16x1xf32>
      tpu.vector_store %arg9[%c0_33, %c0_34, %c0_35], %36 {strides = array<i32>} : memref<2x16x1xf32, #tpu.memory_space<vmem>>, vector<2x16x1xf32>,
      %cst_36 = arith.constant 0.000000e+00 : f32
      %38 = vector.broadcast %cst_36 : f32 to vector<2x16x1xf32>
      %c0_37 = arith.constant 0 : index
      %c0_38 = arith.constant 0 : index
      %c0_39 = arith.constant 0 : index
      %39 = vector.load %arg10[%c0_37, %c0_38, %c0_39] : memref<2x16x1xf32, #tpu.memory_space<vmem>>, vector<2x16x1xf32>
      tpu.vector_store %arg10[%c0_37, %c0_38, %c0_39], %38 {strides = array<i32>} : memref<2x16x1xf32, #tpu.memory_space<vmem>>, vector<2x16x1xf32>,
      %cst_40 = arith.constant 0.000000e+00 : f32
      %40 = vector.broadcast %cst_40 : f32 to vector<2x16x8xf32>
      %c0_41 = arith.constant 0 : index
      %c0_42 = arith.constant 0 : index
      %c0_43 = arith.constant 0 : index
      %41 = vector.load %arg11[%c0_41, %c0_42, %c0_43] : memref<2x16x8xf32, #tpu.memory_space<vmem>>, vector<2x16x8xf32>
      tpu.vector_store %arg11[%c0_41, %c0_42, %c0_43], %40 {strides = array<i32>} : memref<2x16x8xf32, #tpu.memory_space<vmem>>, vector<2x16x8xf32>,
      %c0_44 = arith.constant 0 : index
      %c0_45 = arith.constant 0 : index
      %c0_46 = arith.constant 0 : index
      %42 = vector.load %arg4[%c0_44, %c0_45, %c0_46] : memref<1x16x16xf32, #tpu.memory_space<vmem>>, vector<1x16x16xf32>
      %43 = vector.shape_cast %42 : vector<1x16x16xf32> to vector<16x16xf32>
      %cst_47 = arith.constant 0.353553385 : f32
      %44 = vector.broadcast %cst_47 : f32 to vector<16x16xf32>
      %45 = arith.mulf %43, %44 : vector<16x16xf32>
      %46 = vector.shape_cast %45 : vector<16x16xf32> to vector<2x8x16xf32>
      %47 = tpu.transpose %46, [0, 2, 1] : vector<2x8x16xf32> -> vector<2x16x8xf32>
      %c0_48 = arith.constant 0 : index
      %c0_49 = arith.constant 0 : index
      %c0_50 = arith.constant 0 : index
      %48 = vector.load %arg8[%c0_48, %c0_49, %c0_50] : memref<2x16x8xf32, #tpu.memory_space<vmem>>, vector<2x16x8xf32>
      tpu.vector_store %arg8[%c0_48, %c0_49, %c0_50], %47 {strides = array<i32>} : memref<2x16x8xf32, #tpu.memory_space<vmem>>, vector<2x16x8xf32>,
    } else {
    }
    %c0 = arith.constant 0 : index
    %c0_1 = arith.constant 0 : index
    %c0_2 = arith.constant 0 : index
    %3 = vector.load %arg8[%c0, %c0_1, %c0_2] : memref<2x16x8xf32, #tpu.memory_space<vmem>>, vector<2x16x8xf32>
    %c0_3 = arith.constant 0 : index
    %c0_4 = arith.constant 0 : index
    %c0_5 = arith.constant 0 : index
    %4 = vector.load %arg5[%c0_3, %c0_4, %c0_5] : memref<1x16x16xf32, #tpu.memory_space<vmem>>, vector<1x16x16xf32>
    %5 = vector.shape_cast %4 : vector<1x16x16xf32> to vector<16x16xf32>
    %6 = vector.shape_cast %5 : vector<16x16xf32> to vector<2x8x16xf32>
    %c0_6 = arith.constant 0 : index
    %c0_7 = arith.constant 0 : index
    %c0_8 = arith.constant 0 : index
    %7 = vector.load %arg6[%c0_6, %c0_7, %c0_8] : memref<1x16x16xf32, #tpu.memory_space<vmem>>, vector<1x16x16xf32>
    %8 = vector.shape_cast %7 : vector<1x16x16xf32> to vector<16x16xf32>
    %9 = vector.shape_cast %8 : vector<16x16xf32> to vector<2x8x16xf32>
    %cst = arith.constant dense<0.000000e+00> : vector<2x16x16xf32>
    %10 = tpu.matmul %3, %6, %cst {dimension_numbers = #tpu.dot_dimension_numbers<[2], [1], [1], [2], [0, 0, 0, 1, 1, 2], [0], [0]>} : vector<2x16x8xf32>, vector<2x8x16xf32>, vector<2x16x16xf32> -> vector<2x16x16xf32>
    %c0_9 = arith.constant 0 : index
    %c0_10 = arith.constant 0 : index
    %c0_11 = arith.constant 0 : index
    %11 = vector.load %arg9[%c0_9, %c0_10, %c0_11] : memref<2x16x1xf32, #tpu.memory_space<vmem>>, vector<2x16x1xf32>
    %cst_12 = arith.constant dense<0xFF800000> : vector<2x16xf32>
    %12 = vector.multi_reduction <maximumf>, %10, %cst_12 [2] : vector<2x16x16xf32> to vector<2x16xf32>
    %13 = vector.shape_cast %12 : vector<2x16xf32> to vector<2x16x1xf32>
    %14 = arith.maximumf %11, %13 : vector<2x16x1xf32>
    %15 = arith.subf %11, %14 : vector<2x16x1xf32>
    %16 = math.exp %15 : vector<2x16x1xf32>
    %17 = vector.broadcast %14 : vector<2x16x1xf32> to vector<2x16x16xf32>
    %18 = arith.subf %10, %17 : vector<2x16x16xf32>
    %19 = math.exp %18 : vector<2x16x16xf32>
    %c0_13 = arith.constant 0 : index
    %c0_14 = arith.constant 0 : index
    %c0_15 = arith.constant 0 : index
    %20 = vector.load %arg10[%c0_13, %c0_14, %c0_15] : memref<2x16x1xf32, #tpu.memory_space<vmem>>, vector<2x16x1xf32>
    %21 = arith.mulf %16, %20 : vector<2x16x1xf32>
    %cst_16 = arith.constant dense<0.000000e+00> : vector<2x16xf32>
    %22 = vector.multi_reduction <add>, %19, %cst_16 [2] : vector<2x16x16xf32> to vector<2x16xf32>
    %23 = vector.shape_cast %22 : vector<2x16xf32> to vector<2x16x1xf32>
    %24 = arith.addf %21, %23 : vector<2x16x1xf32>
    %c0_17 = arith.constant 0 : index
    %c0_18 = arith.constant 0 : index
    %c0_19 = arith.constant 0 : index
    %25 = vector.load %arg10[%c0_17, %c0_18, %c0_19] : memref<2x16x1xf32, #tpu.memory_space<vmem>>, vector<2x16x1xf32>
    tpu.vector_store %arg10[%c0_17, %c0_18, %c0_19], %24 {strides = array<i32>} : memref<2x16x1xf32, #tpu.memory_space<vmem>>, vector<2x16x1xf32>,
    %cst_20 = arith.constant dense<0.000000e+00> : vector<2x16x8xf32>
    %26 = tpu.matmul %19, %9, %cst_20 {dimension_numbers = #tpu.dot_dimension_numbers<[2], [2], [1], [1], [0, 0, 0, 1, 1, 1], [0], [0]>} : vector<2x16x16xf32>, vector<2x8x16xf32>, vector<2x16x8xf32> -> vector<2x16x8xf32>
    %c0_21 = arith.constant 0 : index
    %c0_22 = arith.constant 0 : index
    %c0_23 = arith.constant 0 : index
    %27 = vector.load %arg11[%c0_21, %c0_22, %c0_23] : memref<2x16x8xf32, #tpu.memory_space<vmem>>, vector<2x16x8xf32>
    %28 = vector.broadcast %16 : vector<2x16x1xf32> to vector<2x16x8xf32>
    %29 = arith.mulf %28, %27 : vector<2x16x8xf32>
    %30 = arith.addf %29, %26 : vector<2x16x8xf32>
    %c0_24 = arith.constant 0 : index
    %c0_25 = arith.constant 0 : index
    %c0_26 = arith.constant 0 : index
    %31 = vector.load %arg11[%c0_24, %c0_25, %c0_26] : memref<2x16x8xf32, #tpu.memory_space<vmem>>, vector<2x16x8xf32>
    tpu.vector_store %arg11[%c0_24, %c0_25, %c0_26], %30 {strides = array<i32>} : memref<2x16x8xf32, #tpu.memory_space<vmem>>, vector<2x16x8xf32>,
    %c0_27 = arith.constant 0 : index
    %c0_28 = arith.constant 0 : index
    %c0_29 = arith.constant 0 : index
    %32 = vector.load %arg9[%c0_27, %c0_28, %c0_29] : memref<2x16x1xf32, #tpu.memory_space<vmem>>, vector<2x16x1xf32>
    tpu.vector_store %arg9[%c0_27, %c0_28, %c0_29], %14 {strides = array<i32>} : memref<2x16x1xf32, #tpu.memory_space<vmem>>, vector<2x16x1xf32>,
    %c0_i32_30 = arith.constant 0 : i32
    %33 = arith.cmpi eq, %arg3, %c0_i32_30 : i32
    %34 = arith.extui %33 : i1 to i32
    %c0_i32_31 = arith.constant 0 : i32
    %35 = arith.cmpi ne, %34, %c0_i32_31 : i32
    scf.if %35 {
      %c0_32 = arith.constant 0 : index
      %c0_33 = arith.constant 0 : index
      %c0_34 = arith.constant 0 : index
      %36 = vector.load %arg10[%c0_32, %c0_33, %c0_34] : memref<2x16x1xf32, #tpu.memory_space<vmem>>, vector<2x16x1xf32>
      %37 = tpu.reciprocal %36 {approx = true} : vector<2x16x1xf32> -> vector<2x16x1xf32>
      %38 = arith.mulf %36, %37 : vector<2x16x1xf32>
      %cst_35 = arith.constant 2.000000e+00 : f32
      %39 = vector.broadcast %cst_35 : f32 to vector<2x16x1xf32>
      %40 = arith.subf %39, %38 : vector<2x16x1xf32>
      %41 = arith.mulf %37, %40 : vector<2x16x1xf32>
      %c0_36 = arith.constant 0 : index
      %c0_37 = arith.constant 0 : index
      %c0_38 = arith.constant 0 : index
      %42 = vector.load %arg11[%c0_36, %c0_37, %c0_38] : memref<2x16x8xf32, #tpu.memory_space<vmem>>, vector<2x16x8xf32>
      %43 = vector.broadcast %41 : vector<2x16x1xf32> to vector<2x16x8xf32>
      %44 = arith.mulf %42, %43 : vector<2x16x8xf32>
      %45 = tpu.transpose %44, [0, 2, 1] : vector<2x16x8xf32> -> vector<2x8x16xf32>
      %46 = vector.shape_cast %45 : vector<2x8x16xf32> to vector<16x16xf32>
      %c0_39 = arith.constant 0 : index
      %c0_40 = arith.constant 0 : index
      %c0_41 = arith.constant 0 : index
      %47 = vector.load %arg7[%c0_39, %c0_40, %c0_41] : memref<1x16x16xf32, #tpu.memory_space<vmem>>, vector<1x16x16xf32>
      %48 = vector.shape_cast %47 : vector<1x16x16xf32> to vector<16x16xf32>
      %49 = vector.shape_cast %46 : vector<16x16xf32> to vector<1x16x16xf32>
      tpu.vector_store %arg7[%c0_39, %c0_40, %c0_41], %49 {strides = array<i32>} : memref<1x16x16xf32, #tpu.memory_space<vmem>>, vector<1x16x16xf32>,
    } else {
    }
    return
  }
  func.func @transform_0(%arg0: i32, %arg1: i32, %arg2: i32, %arg3: i32) -> (i32, i32, i32) {
    %c0_i32 = arith.constant 0 : i32
    return %arg0, %arg1, %arg2 : i32, i32, i32
  }
  func.func @transform_1(%arg0: i32, %arg1: i32, %arg2: i32, %arg3: i32) -> (i32, i32, i32) {
    %c1_i32 = arith.constant 1 : i32
    %0 = arith.addi %c1_i32, %arg1 : i32
    %c0_i32 = arith.constant 0 : i32
    return %arg0, %0, %arg3 : i32, i32, i32
  }
  func.func @transform_2(%arg0: i32, %arg1: i32, %arg2: i32, %arg3: i32) -> (i32, i32, i32) {
    %c2_i32 = arith.constant 2 : i32
    %0 = arith.addi %c2_i32, %arg1 : i32
    %c0_i32 = arith.constant 0 : i32
    return %arg0, %0, %arg3 : i32, i32, i32
  }
  func.func @transform_3(%arg0: i32, %arg1: i32, %arg2: i32, %arg3: i32) -> (i32, i32, i32) {
    %c0_i32 = arith.constant 0 : i32
    return %arg0, %arg1, %arg2 : i32, i32, i32
  }
}

</mosaic_0001>

<llo_original>
// kernel: tpu_custom_call.1
$region0: #{tpu_custom_call.1}
  #allocation0 [shape = 'u32[]', space=smem, size = 0x4, offset = 0x4, fixed_abs, tag = 'smem constant byte address 0x4 - core index']
  #allocation1 [shape = 'u32[72,128]{1,0:T(1,128)}', space=vmem, size = 0x9000, scoped, tag = 'internal scratch']
  #allocation2 [shape = 'f32[2,16,8]{2,1,0:T(8,128)}', space=vmem, size = 0x4000, scoped, tag = 'scratch operand']
  #allocation3 [shape = 'f32[2,16,1]{2,1,0:T(8,128)}', space=vmem, size = 0x4000, scoped, tag = 'scratch operand']
  #allocation4 [shape = 'f32[2,16,1]{2,1,0:T(8,128)}', space=vmem, size = 0x4000, scoped, tag = 'scratch operand']
  #allocation5 [shape = 'f32[2,16,8]{2,1,0:T(8,128)}', space=vmem, size = 0x4000, scoped, tag = 'scratch operand']
  %s0 = inlined_call_operand.vmem [shape: f32[2,48,16], index: 0, kind: input, shape index: {}]
  %s1 = inlined_call_operand.vmem [shape: f32[2,48,16], index: 1, kind: input, shape index: {}]
  %s2 = inlined_call_operand.vmem [shape: f32[2,48,16], index: 2, kind: input, shape index: {}]
  %s3 = inlined_call_operand.hbm [shape: f32[2,16,16], index: 3, kind: output, shape index: {}]
  %s4 = sld [smem:[#allocation0]]
  $region53: #{tpu_custom_call.1} parent=0
    _
  %s6 = ssub.s32 1, %s4
  %s7 = scalar_select 0, %s6, %s4
  $region1: #{tpu_custom_call.1} parent=0
    #allocation6 [shape = 'u8[16384]{0}', space=vmem, size = 0x4000, scoped, tag = 'output window, operand 0']
    #allocation7 [shape = 's32[2]{0}', space=sflag, size = 0x8, scoped, tag = 'scoped memory for tpu_custom_call.1']
    %8 = vsyncpa [#allocation7], 0
    %s9 = scalar_lea.sflag [#allocation7], 1
    %10 = vsyncpa %s9, 0
    loop: start=0, step=1, limit=4
    $region2: #{tpu_custom_call.1} parent=1 // loop_pre_header
      _
    $region3: #{tpu_custom_call.1} parent=1 // loop_header
      %s12 = sphi 0, %s16
      %p13 = scmp.ge.s32.totalorder %s12, 4
      %s19 = sphi 0, %s45
      %s20 = sphi 0, %s41
      %s21 = sphi 0, %s37
      %s22 = sphi 0, %s33
      %s23 = sphi 0, %s19
      %s24 = sphi 0, %s20
      %s25 = sphi 0, %s21
      %s26 = sphi 0, %s22
      %s27 = sphi 0, %s23
      %s28 = sphi 0, %s24
      %s29 = sphi 0, %s25
      %s30 = sphi 0, %s26
      %s52 = sphi 0, %s54
      %s55 = sphi 0, %s52
      %s56 = sphi 0, %s55
      %s72 = sphi 0, %s56
      %s84 = sphi 0, %s86
      %s87 = sphi 0, %s84
      %s88 = sphi 0, %s87
      %s104 = sphi 0, %s88
      %s116 = sphi 0, %s118
      %s119 = sphi 0, %s116
      %s120 = sphi 0, %s119
      %s136 = sphi 0, %s120
      %s146 = sphi 0, %s148
      %s149 = sphi 0, %s146
      %s150 = sphi 0, %s149
      %s166 = sphi 0, %s150
    $region4: #{tpu_custom_call.1} parent=1 // loop_header_branch
      %15 = sbr.rel (%p13) target = $region8
    $region5: #{tpu_custom_call.1} parent=1 // loop_body
      %s17 = ssub.s32 %s12, 1
      %s18 = ssub.s32 %s12, 2
      %s31 = sadd.s32 1, %s22
      %p32 = scmp.ge.s32.totalorder %s31, 1
      %s33 = scalar_select %p32, 0, %s31
      %s34 = sadd.s32 1, %s21
      %s35 = scalar_select %p32, %s34, %s21
      %p36 = scmp.ge.s32.totalorder %s35, 1
      %s37 = scalar_select %p36, 0, %s35
      %s38 = sadd.s32 1, %s20
      %s39 = scalar_select %p36, %s38, %s20
      %p40 = scmp.ge.s32.totalorder %s39, 1
      %s41 = scalar_select %p40, 0, %s39
      %s42 = sadd.s32 1, %s19
      %s43 = scalar_select %p40, %s42, %s19
      %p44 = scmp.ge.s32.totalorder %s43, 2
      %s45 = scalar_select %p44, 0, %s43
      %s46 = ssub.s32 %s19, %s45
      %s47 = ssub.s32 %s20, %s41
      %s48 = sor.u32 %s46, %s47
      %s49 = ssub.s32 %s21, %s37
      %s50 = sor.u32 %s48, %s49
      %p51 = scmp.eq.s32.totalorder %s50, 0
      %s53 = sadd.s32 %s52, 1
      %s54 = scalar_select %p51, %s52, %s53
      %p57 = pneg %p51
      %p58 = scmp.eq.s32.totalorder %s12, 1
      %p59 = por %p57, %p58
      %p60 = scmp.ne.s32.totalorder %s52, %s55
      %p61 = scmp.eq.s32.totalorder %s12, 0
      %p62 = por %p60, %p61
      %p63 = scmp.ne.s32.totalorder %s52, %s55
      %p64 = scmp.eq.s32.totalorder %s17, 1
      %p65 = por %p63, %p64
      %p66 = scmp.ne.s32.totalorder %s55, %s56
      %p67 = scmp.eq.s32.totalorder %s17, 0
      %p68 = por %p66, %p67
      %p69 = scmp.ne.s32.totalorder %s55, %s56
      %p70 = scmp.eq.s32.totalorder %s18, 1
      %p71 = por %p69, %p70
      %p73 = scmp.ne.s32.totalorder %s56, %s72
      %p74 = scmp.eq.s32.totalorder %s18, 0
      %p75 = por %p73, %p74
      %s76 = sadd.s32 %s20, 1
      %s77 = sadd.s32 %s41, 1
      %s78 = ssub.s32 %s19, %s45
      %s79 = ssub.s32 %s76, %s77
      %s80 = sor.u32 %s78, %s79
      %s81 = ssub.s32 %s22, %s33
      %s82 = sor.u32 %s80, %s81
      %p83 = scmp.eq.s32.totalorder %s82, 0
      %s85 = sadd.s32 %s84, 1
      %s86 = scalar_select %p83, %s84, %s85
      %p89 = pneg %p83
      %p90 = scmp.eq.s32.totalorder %s12, 1
      %p91 = por %p89, %p90
      %p92 = scmp.ne.s32.totalorder %s84, %s87
      %p93 = scmp.eq.s32.totalorder %s12, 0
      %p94 = por %p92, %p93
      %p95 = scmp.ne.s32.totalorder %s84, %s87
      %p96 = scmp.eq.s32.totalorder %s17, 1
      %p97 = por %p95, %p96
      %p98 = scmp.ne.s32.totalorder %s87, %s88
      %p99 = scmp.eq.s32.totalorder %s17, 0
      %p100 = por %p98, %p99
      %p101 = scmp.ne.s32.totalorder %s87, %s88
      %p102 = scmp.eq.s32.totalorder %s18, 1
      %p103 = por %p101, %p102
      %p105 = scmp.ne.s32.totalorder %s88, %s104
      %p106 = scmp.eq.s32.totalorder %s18, 0
      %p107 = por %p105, %p106
      %s108 = sadd.s32 %s20, 2
      %s109 = sadd.s32 %s41, 2
      %s110 = ssub.s32 %s19, %s45
      %s111 = ssub.s32 %s108, %s109
      %s112 = sor.u32 %s110, %s111
      %s113 = ssub.s32 %s22, %s33
      %s114 = sor.u32 %s112, %s113
      %p115 = scmp.eq.s32.totalorder %s114, 0
      %s117 = sadd.s32 %s116, 1
      %s118 = scalar_select %p115, %s116, %s117
      %p121 = pneg %p115
      %p122 = scmp.eq.s32.totalorder %s12, 1
      %p123 = por %p121, %p122
      %p124 = scmp.ne.s32.totalorder %s116, %s119
      %p125 = scmp.eq.s32.totalorder %s12, 0
      %p126 = por %p124, %p125
      %p127 = scmp.ne.s32.totalorder %s116, %s119
      %p128 = scmp.eq.s32.totalorder %s17, 1
      %p129 = por %p127, %p128
      %p130 = scmp.ne.s32.totalorder %s119, %s120
      %p131 = scmp.eq.s32.totalorder %s17, 0
      %p132 = por %p130, %p131
      %p133 = scmp.ne.s32.totalorder %s119, %s120
      %p134 = scmp.eq.s32.totalorder %s18, 1
      %p135 = por %p133, %p134
      %p137 = scmp.ne.s32.totalorder %s120, %s136
      %p138 = scmp.eq.s32.totalorder %s18, 0
      %p139 = por %p137, %p138
      %s140 = ssub.s32 %s19, %s45
      %s141 = ssub.s32 %s20, %s41
      %s142 = sor.u32 %s140, %s141
      %s143 = ssub.s32 %s21, %s37
      %s144 = sor.u32 %s142, %s143
      %p145 = scmp.eq.s32.totalorder %s144, 0
      %s147 = sadd.s32 %s146, 1
      %s148 = scalar_select %p145, %s146, %s147
      %p151 = pneg %p145
      %p152 = scmp.eq.s32.totalorder %s12, 1
      %p153 = por %p151, %p152
      %p154 = scmp.ne.s32.totalorder %s146, %s149
      %p155 = scmp.eq.s32.totalorder %s12, 0
      %p156 = por %p154, %p155
      %p157 = scmp.ne.s32.totalorder %s146, %s149
      %p158 = scmp.eq.s32.totalorder %s17, 1
      %p159 = por %p157, %p158
      %p160 = scmp.ne.s32.totalorder %s149, %s150
      %p161 = scmp.eq.s32.totalorder %s17, 0
      %p162 = por %p160, %p161
      %p163 = scmp.ne.s32.totalorder %s149, %s150
      %p164 = scmp.eq.s32.totalorder %s18, 1
      %p165 = por %p163, %p164
      %p167 = scmp.ne.s32.totalorder %s150, %s166
      %p168 = scmp.eq.s32.totalorder %s18, 0
      %p169 = por %p167, %p168
      %p170 = scmp.le.s32.totalorder 1, %s12
      %p171 = scmp.lt.s32.totalorder %s12, 3
      %p172 = pnand %p170, %p171
      %p173 = pneg %p172
      // Predicated region
      $region9: #{tpu_custom_call.1} parent=5 // pred_check
        _
      $region10: #{tpu_custom_call.1} parent=5 // pred_check_branch
        %175 = sbr.rel (%p172) target = $region12
      $region11: #{tpu_custom_call.1} parent=5 // pred_region
        %s176 = ssub.s32 %s12, 1
      $region12: #{tpu_custom_call.1} parent=5 // pred_fallthru
        _
      %p177 = scmp.lt.s32.totalorder %s12, 2
      // Predicated region
      $region13: #{tpu_custom_call.1} parent=5 // pred_check
        %p178 = pneg %p177
      $region14: #{tpu_custom_call.1} parent=5 // pred_check_branch
        %180 = sbr.rel (%p178) target = $region16
      $region15: #{tpu_custom_call.1} parent=5 // pred_region
        // Predicated region
        $region17: #{tpu_custom_call.1} parent=15 // pred_check
          %p181 = pneg %p62
        $region18: #{tpu_custom_call.1} parent=15 // pred_check_branch
          %183 = sbr.rel (%p181) target = $region20
        $region19: #{tpu_custom_call.1} parent=15 // pred_region
          %s184 = smul.u32 2, %s20
          %p185 = scmp.lt.s32.totalorder %s19, 1
          %s186 = scalar_select %p185, %s19, 1
          %p187 = scmp.lt.s32.totalorder %s184, 5
          %s188 = scalar_select %p187, %s184, 5
          %p189 = scmp.lt.s32.totalorder %s21, 0
          %s190 = scalar_select %p189, %s21, 0
          %s191 = sadd.s32 %s190, %s188
          %s192 = smul.addr %s186, 6
          %s193 = sadd.s32 %s191, %s192
          %s194 = smul.addr %s193, 8
          %s195 = scalar_lea.vmem %s0, %s194
          %s196 = smul.u32 2, %s20
        $region20: #{tpu_custom_call.1} parent=15 // pred_fallthru
          _
        // Predicated region
        $region21: #{tpu_custom_call.1} parent=15 // pred_check
          %p197 = pneg %p94
        $region22: #{tpu_custom_call.1} parent=15 // pred_check_branch
          %199 = sbr.rel (%p197) target = $region24
        $region23: #{tpu_custom_call.1} parent=15 // pred_region
          %s200 = sadd.s32 %s20, 1
          %s201 = smul.u32 2, %s200
          %p202 = scmp.lt.s32.totalorder %s19, 1
          %s203 = scalar_select %p202, %s19, 1
          %p204 = scmp.lt.s32.totalorder %s201, 5
          %s205 = scalar_select %p204, %s201, 5
          %p206 = scmp.lt.s32.totalorder %s22, 0
          %s207 = scalar_select %p206, %s22, 0
          %s208 = sadd.s32 %s207, %s205
          %s209 = smul.addr %s203, 6
          %s210 = sadd.s32 %s208, %s209
          %s211 = smul.addr %s210, 8
          %s212 = scalar_lea.vmem %s1, %s211
          %s213 = sadd.s32 %s20, 1
          %s214 = smul.u32 2, %s213
        $region24: #{tpu_custom_call.1} parent=15 // pred_fallthru
          _
        // Predicated region
        $region25: #{tpu_custom_call.1} parent=15 // pred_check
          %p215 = pneg %p126
        $region26: #{tpu_custom_call.1} parent=15 // pred_check_branch
          %217 = sbr.rel (%p215) target = $region28
        $region27: #{tpu_custom_call.1} parent=15 // pred_region
          %s218 = sadd.s32 %s20, 2
          %s219 = smul.u32 2, %s218
          %p220 = scmp.lt.s32.totalorder %s19, 1
          %s221 = scalar_select %p220, %s19, 1
          %p222 = scmp.lt.s32.totalorder %s219, 5
          %s223 = scalar_select %p222, %s219, 5
          %p224 = scmp.lt.s32.totalorder %s22, 0
          %s225 = scalar_select %p224, %s22, 0
          %s226 = sadd.s32 %s225, %s223
          %s227 = smul.addr %s221, 6
          %s228 = sadd.s32 %s226, %s227
          %s229 = smul.addr %s228, 8
          %s230 = scalar_lea.vmem %s2, %s229
          %s231 = sadd.s32 %s20, 2
          %s232 = smul.u32 2, %s231
        $region28: #{tpu_custom_call.1} parent=15 // pred_fallthru
          _
      $region16: #{tpu_custom_call.1} parent=5 // pred_fallthru
        _
      %p233 = scmp.le.s32.totalorder 1, %s12
      %p234 = scmp.lt.s32.totalorder %s12, 3
      %p235 = pnand %p233, %p234
      %p236 = pneg %p235
      // Predicated region
      $region29: #{tpu_custom_call.1} parent=5 // pred_check
        _
      $region30: #{tpu_custom_call.1} parent=5 // pred_check_branch
        %238 = sbr.rel (%p235) target = $region32
      $region31: #{tpu_custom_call.1} parent=5 // pred_region
        %s239 = ssub.s32 %s12, 1
        %s240 = smul.u32 2, %s24
        %p241 = scmp.lt.s32.totalorder %s23, 1
        %s242 = scalar_select %p241, %s23, 1
        %p243 = scmp.lt.s32.totalorder %s240, 5
        %s244 = scalar_select %p243, %s240, 5
        %p245 = scmp.lt.s32.totalorder %s25, 0
        %s246 = scalar_select %p245, %s25, 0
        %s247 = sadd.s32 %s246, %s244
        %s248 = smul.addr %s242, 6
        %s249 = sadd.s32 %s247, %s248
        %s250 = smul.addr %s249, 8
        %s251 = scalar_lea.vmem %s0, %s250
        %p252 = pneg %p68
        %p253 = pneg %p65
        %s254 = sadd.s32 %s24, 1
        %s255 = smul.u32 2, %s254
        %p256 = scmp.lt.s32.totalorder %s23, 1
        %s257 = scalar_select %p256, %s23, 1
        %p258 = scmp.lt.s32.totalorder %s255, 5
        %s259 = scalar_select %p258, %s255, 5
        %p260 = scmp.lt.s32.totalorder %s26, 0
        %s261 = scalar_select %p260, %s26, 0
        %s262 = sadd.s32 %s261, %s259
        %s263 = smul.addr %s257, 6
        %s264 = sadd.s32 %s262, %s263
        %s265 = smul.addr %s264, 8
        %s266 = scalar_lea.vmem %s1, %s265
        %p267 = pneg %p100
        %p268 = pneg %p97
        %s269 = sadd.s32 %s24, 2
        %s270 = smul.u32 2, %s269
        %p271 = scmp.lt.s32.totalorder %s23, 1
        %s272 = scalar_select %p271, %s23, 1
        %p273 = scmp.lt.s32.totalorder %s270, 5
        %s274 = scalar_select %p273, %s270, 5
        %p275 = scmp.lt.s32.totalorder %s26, 0
        %s276 = scalar_select %p275, %s26, 0
        %s277 = sadd.s32 %s276, %s274
        %s278 = smul.addr %s272, 6
        %s279 = sadd.s32 %s277, %s278
        %s280 = smul.addr %s279, 8
        %s281 = scalar_lea.vmem %s2, %s280
        %p282 = pneg %p132
        %p283 = pneg %p129
        %p284 = pneg %p162
        %p285 = pneg %p159
        %s286 = sand.u32 %s149, 1
        %s287 = scalar_lea.sflag [#allocation7], %s286
        %s288 = sand.u32 %s149, 1
        %s289 = smul.addr %s288, 16
        %s290 = scalar_lea.vmem [#allocation6], %s289
        %s291 = smul.u32 2, %s24
        %p292 = scmp.lt.s32.totalorder %s23, 1
        %s293 = scalar_select %p292, %s23, 1
        %p294 = scmp.lt.s32.totalorder %s291, 5
        %s295 = scalar_select %p294, %s291, 5
        %p296 = scmp.lt.s32.totalorder %s25, 0
        %s297 = scalar_select %p296, %s25, 0
        %s298 = sadd.s32 %s297, %s295
        %s299 = smul.addr %s293, 6
        %s300 = sadd.s32 %s298, %s299
        %s301 = smul.addr %s300, 8
        %s302 = scalar_lea.vmem %s0, %s301
        %s303 = smul.u32 2, %s24
        %s304 = sadd.s32 %s24, 1
        %s305 = smul.u32 2, %s304
        %p306 = scmp.lt.s32.totalorder %s23, 1
        %s307 = scalar_select %p306, %s23, 1
        %p308 = scmp.lt.s32.totalorder %s305, 5
        %s309 = scalar_select %p308, %s305, 5
        %p310 = scmp.lt.s32.totalorder %s26, 0
        %s311 = scalar_select %p310, %s26, 0
        %s312 = sadd.s32 %s311, %s309
        %s313 = smul.addr %s307, 6
        %s314 = sadd.s32 %s312, %s313
        %s315 = smul.addr %s314, 8
        %s316 = scalar_lea.vmem %s1, %s315
        %s317 = sadd.s32 %s24, 1
        %s318 = smul.u32 2, %s317
        %s319 = sadd.s32 %s24, 2
        %s320 = smul.u32 2, %s319
        %p321 = scmp.lt.s32.totalorder %s23, 1
        %s322 = scalar_select %p321, %s23, 1
        %p323 = scmp.lt.s32.totalorder %s320, 5
        %s324 = scalar_select %p323, %s320, 5
        %p325 = scmp.lt.s32.totalorder %s26, 0
        %s326 = scalar_select %p325, %s26, 0
        %s327 = sadd.s32 %s326, %s324
        %s328 = smul.addr %s322, 6
        %s329 = sadd.s32 %s327, %s328
        %s330 = smul.addr %s329, 8
        %s331 = scalar_lea.vmem %s2, %s330
        %s332 = sadd.s32 %s24, 2
        %s333 = smul.u32 2, %s332
        %s334 = smul.u32 2, %s24
        %p335 = scmp.eq.s32.totalorder %s26, 0
        // Predicated region
        $region33: #{tpu_custom_call.1} parent=31 // pred_check
          %p336 = pneg %p335
        $region34: #{tpu_custom_call.1} parent=31 // pred_check_branch
          %338 = sbr.rel (%p336) target = $region36
        $region35: #{tpu_custom_call.1} parent=31 // pred_region
          %vm339 = vcmask 7168
          %340 = vst.msk [vmem:[#allocation3] sm:$0xff] %vm339, -inf
          %341 = vst.msk [vmem:[#allocation3 + $0x8] sm:$0xff] %vm339, -inf
          %342 = vst.msk [vmem:[#allocation3 + $0x10] sm:$0xff] %vm339, -inf
          %343 = vst.msk [vmem:[#allocation3 + $0x18] sm:$0xff] %vm339, -inf
          %344 = vst.msk [vmem:[#allocation4] sm:$0xff] %vm339, 0.0
          %345 = vst.msk [vmem:[#allocation4 + $0x8] sm:$0xff] %vm339, 0.0
          %346 = vst.msk [vmem:[#allocation4 + $0x10] sm:$0xff] %vm339, 0.0
          %347 = vst.msk [vmem:[#allocation4 + $0x18] sm:$0xff] %vm339, 0.0
          %vm348 = vcmask 64512
          %349 = vst.msk [vmem:[#allocation5] sm:$0xff] %vm348, 0.0
          %350 = vst.msk [vmem:[#allocation5 + $0x8] sm:$0xff] %vm348, 0.0
          %351 = vst.msk [vmem:[#allocation5 + $0x10] sm:$0xff] %vm348, 0.0
          %352 = vst.msk [vmem:[#allocation5 + $0x18] sm:$0xff] %vm348, 0.0
          %v353 = vld [vmem:[%s302] sm:$0xff]
          %v354 = vld [vmem:[%s302 + $0x8] sm:$0xff]
          %v355 = vmul.f32 %v353, 0.35355338
          %v356 = vmul.f32 %v354, 0.35355338
          %357 = vxpose.xlu0.b32.start [1/16] %v355, 128
          %358 = vxpose.xlu0.b32.cont [2/16] 0.0, 128
          %359 = vxpose.xlu0.b32.cont [3/16] 0.0, 128
          %360 = vxpose.xlu0.b32.cont [4/16] 0.0, 128
          %361 = vxpose.xlu0.b32.cont [5/16] 0.0, 128
          %362 = vxpose.xlu0.b32.cont [6/16] 0.0, 128
          %363 = vxpose.xlu0.b32.cont [7/16] 0.0, 128
          %364 = vxpose.xlu0.b32.cont [8/16] 0.0, 128
          %365 = vxpose.xlu0.b32.cont [9/16] 0.0, 128
          %366 = vxpose.xlu0.b32.cont [10/16] 0.0, 128
          %367 = vxpose.xlu0.b32.cont [11/16] 0.0, 128
          %368 = vxpose.xlu0.b32.cont [12/16] 0.0, 128
          %369 = vxpose.xlu0.b32.cont [13/16] 0.0, 128
          %370 = vxpose.xlu0.b32.cont [14/16] 0.0, 128
          %371 = vxpose.xlu0.b32.cont [15/16] 0.0, 128
          %372 = vxpose.xlu0.b32.end [16/16] 0.0, 128
          %v373 = vpop.trf.xlu0
          %v374 = vpop.trf.xlu0
          %v375 = vpop.trf.xlu0
          %v376 = vpop.trf.xlu0
          %v377 = vpop.trf.xlu0
          %v378 = vpop.trf.xlu0
          %v379 = vpop.trf.xlu0
          %v380 = vpop.trf.xlu0
          %v381 = vpop.trf.xlu0
          %v382 = vpop.trf.xlu0
          %v383 = vpop.trf.xlu0
          %v384 = vpop.trf.xlu0
          %v385 = vpop.trf.xlu0
          %v386 = vpop.trf.xlu0
          %v387 = vpop.trf.xlu0
          %v388 = vpop.trf.xlu0
          %389 = vxpose.xlu0.b32.start [1/16] %v356, 128
          %390 = vxpose.xlu0.b32.cont [2/16] 0.0, 128
          %391 = vxpose.xlu0.b32.cont [3/16] 0.0, 128
          %392 = vxpose.xlu0.b32.cont [4/16] 0.0, 128
          %393 = vxpose.xlu0.b32.cont [5/16] 0.0, 128
          %394 = vxpose.xlu0.b32.cont [6/16] 0.0, 128
          %395 = vxpose.xlu0.b32.cont [7/16] 0.0, 128
          %396 = vxpose.xlu0.b32.cont [8/16] 0.0, 128
          %397 = vxpose.xlu0.b32.cont [9/16] 0.0, 128
          %398 = vxpose.xlu0.b32.cont [10/16] 0.0, 128
          %399 = vxpose.xlu0.b32.cont [11/16] 0.0, 128
          %400 = vxpose.xlu0.b32.cont [12/16] 0.0, 128
          %401 = vxpose.xlu0.b32.cont [13/16] 0.0, 128
          %402 = vxpose.xlu0.b32.cont [14/16] 0.0, 128
          %403 = vxpose.xlu0.b32.cont [15/16] 0.0, 128
          %404 = vxpose.xlu0.b32.end [16/16] 0.0, 128
          %v405 = vpop.trf.xlu0
          %v406 = vpop.trf.xlu0
          %v407 = vpop.trf.xlu0
          %v408 = vpop.trf.xlu0
          %v409 = vpop.trf.xlu0
          %v410 = vpop.trf.xlu0
          %v411 = vpop.trf.xlu0
          %v412 = vpop.trf.xlu0
          %v413 = vpop.trf.xlu0
          %v414 = vpop.trf.xlu0
          %v415 = vpop.trf.xlu0
          %v416 = vpop.trf.xlu0
          %v417 = vpop.trf.xlu0
          %v418 = vpop.trf.xlu0
          %v419 = vpop.trf.xlu0
          %v420 = vpop.trf.xlu0
          %421 = vst.msk [vmem:[#allocation2] sm:$0xff] %vm348, %v373
          %422 = vst.msk [vmem:[#allocation2 + $0x8] sm:$0xff] %vm348, %v374
          %423 = vst.msk [vmem:[#allocation2 + $0x10] sm:$0xff] %vm348, %v405
          %424 = vst.msk [vmem:[#allocation2 + $0x18] sm:$0xff] %vm348, %v406
        $region36: #{tpu_custom_call.1} parent=31 // pred_fallthru
          _
        %v425 = vld [vmem:[#allocation2] sm:$0xff]
        %v426 = vld [vmem:[#allocation2 + $0x8] sm:$0xff]
        %v427 = vld [vmem:[#allocation2 + $0x10] sm:$0xff]
        %v428 = vld [vmem:[#allocation2 + $0x18] sm:$0xff]
        %v429 = vld [vmem:[%s316] sm:$0xff]
        %v430 = vld [vmem:[%s316 + $0x8] sm:$0xff]
        %v431 = vld [vmem:[%s331] sm:$0xff]
        %v432 = vld [vmem:[%s331 + $0x8] sm:$0xff]
        %vm433 = vcmask 64512
        %v435 = vsel %vm433, %v425, 0
        %v438 = vsel %vm433, %v426, 0
        %440 = vmatpush.msra.mxu0 0.0
        %441 = vmatpush.msra.mxu0 0.0
        %442 = vmatpush.msra.mxu0 0.0
        %443 = vmatpush.msra.mxu0 0.0
        %444 = vmatpush.msra.mxu0 0.0
        %445 = vmatpush.msra.mxu0 0.0
        %446 = vmatpush.msra.mxu0 0.0
        %447 = vmatpush.msra.mxu0 0.0
        %448 = vmatpush.msra.mxu0 0.0
        %449 = vmatpush.msra.mxu0 0.0
        %450 = vmatpush.msra.mxu0 0.0
        %451 = vmatpush.msra.mxu0 0.0
        %452 = vmatpush.msra.mxu0 0.0
        %453 = vmatpush.msra.mxu0 0.0
        %454 = vmatpush.msra.mxu0 0.0
        %455 = vmatpush.msra.mxu0 %v429
        %456 = vmatmul.f32.gmra.mxu0 %v435
        %v457 = vpop.f32.mrf.mxu0
        %v458 = vadd.f32 0.0, %v457
        %459 = vmatmul.f32.gmra.mxu0 %v438
        %v460 = vpop.f32.mrf.mxu0
        %v461 = vadd.f32 0.0, %v460
        %462 = vdwg.mxu0
        %v464 = vsel %vm433, %v427, 0
        %v467 = vsel %vm433, %v428, 0
        %469 = vmatpush.msra.mxu0 0.0
        %470 = vmatpush.msra.mxu0 0.0
        %471 = vmatpush.msra.mxu0 0.0
        %472 = vmatpush.msra.mxu0 0.0
        %473 = vmatpush.msra.mxu0 0.0
        %474 = vmatpush.msra.mxu0 0.0
        %475 = vmatpush.msra.mxu0 0.0
        %476 = vmatpush.msra.mxu0 0.0
        %477 = vmatpush.msra.mxu0 0.0
        %478 = vmatpush.msra.mxu0 0.0
        %479 = vmatpush.msra.mxu0 0.0
        %480 = vmatpush.msra.mxu0 0.0
        %481 = vmatpush.msra.mxu0 0.0
        %482 = vmatpush.msra.mxu0 0.0
        %483 = vmatpush.msra.mxu0 0.0
        %484 = vmatpush.msra.mxu0 %v430
        %485 = vmatmul.f32.gmra.mxu0 %v464
        %v486 = vpop.f32.mrf.mxu0
        %v487 = vadd.f32 0.0, %v486
        %488 = vmatmul.f32.gmra.mxu0 %v467
        %v489 = vpop.f32.mrf.mxu0
        %v490 = vadd.f32 0.0, %v489
        %491 = vdwg.mxu0
        %v492 = vld [vmem:[#allocation3] sm:$0xff]
        %v493 = vld [vmem:[#allocation3 + $0x8] sm:$0xff]
        %v494 = vld [vmem:[#allocation3 + $0x10] sm:$0xff]
        %v495 = vld [vmem:[#allocation3 + $0x18] sm:$0xff]
        %vm496 = vcmask 130048
        %v497 = vsel %vm496, %v458, -inf
        %498 = vmax.xlane.f32.xlu0 %v497
        %v499 = vpop.xlane.xlu0 %498
        %v500 = vsel %vm496, %v461, -inf
        %501 = vmax.xlane.f32.xlu0 %v500
        %v502 = vpop.xlane.xlu0 %501
        %v503 = vsel %vm496, %v487, -inf
        %504 = vmax.xlane.f32.xlu0 %v503
        %v505 = vpop.xlane.xlu0 %504
        %v506 = vsel %vm496, %v490, -inf
        %507 = vmax.xlane.f32.xlu0 %v506
        %v508 = vpop.xlane.xlu0 %507
        %v509 = vmax.f32 %v492, %v499
        %v510 = vmax.f32 %v493, %v502
        %v511 = vmax.f32 %v494, %v505
        %v512 = vmax.f32 %v495, %v508
        %v513 = vsub.f32 %v492, %v509
        %v514 = vsub.f32 %v493, %v510
        %v515 = vsub.f32 %v494, %v511
        %v516 = vsub.f32 %v495, %v512
        %v517 = vmul.f32 %v513, 1.442695
        %v518 = vpow.pop %v517
        %v519 = vmul.f32 %v514, 1.442695
        %v520 = vpow.pop %v519
        %v521 = vmul.f32 %v515, 1.442695
        %v522 = vpow.pop %v521
        %v523 = vmul.f32 %v516, 1.442695
        %v524 = vpow.pop %v523
        %526 = vset.pattern.permute.xlu0 0
        %527 = vperm.xlu0 %526, %v509
        %v528 = vpop.permute.xlu0 %527
        %531 = vset.pattern.permute.xlu0 0
        %532 = vperm.xlu0 %531, %v510
        %v533 = vpop.permute.xlu0 %532
        %536 = vset.pattern.permute.xlu0 0
        %537 = vperm.xlu0 %536, %v511
        %v538 = vpop.permute.xlu0 %537
        %541 = vset.pattern.permute.xlu0 0
        %542 = vperm.xlu0 %541, %v512
        %v543 = vpop.permute.xlu0 %542
        %v545 = vsub.f32 %v458, %v528
        %v546 = vsub.f32 %v461, %v533
        %v547 = vsub.f32 %v487, %v538
        %v548 = vsub.f32 %v490, %v543
        %v549 = vmul.f32 %v545, 1.442695
        %v550 = vpow.pop %v549
        %v551 = vmul.f32 %v546, 1.442695
        %v552 = vpow.pop %v551
        %v553 = vmul.f32 %v547, 1.442695
        %v554 = vpow.pop %v553
        %v555 = vmul.f32 %v548, 1.442695
        %v556 = vpow.pop %v555
        %v557 = vld [vmem:[#allocation4] sm:$0xff]
        %v558 = vld [vmem:[#allocation4 + $0x8] sm:$0xff]
        %v559 = vld [vmem:[#allocation4 + $0x10] sm:$0xff]
        %v560 = vld [vmem:[#allocation4 + $0x18] sm:$0xff]
        %v561 = vmul.f32 %v518, %v557
        %v562 = vmul.f32 %v520, %v558
        %v563 = vmul.f32 %v522, %v559
        %v564 = vmul.f32 %v524, %v560
        %v565 = vsel %vm496, %v550, 0.0
        %566 = vadd.xlane.f32.xlu0 %v565
        %v567 = vpop.xlane.xlu0 %566
        %v568 = vsel %vm496, %v552, 0.0
        %569 = vadd.xlane.f32.xlu0 %v568
        %v570 = vpop.xlane.xlu0 %569
        %v571 = vsel %vm496, %v554, 0.0
        %572 = vadd.xlane.f32.xlu0 %v571
        %v573 = vpop.xlane.xlu0 %572
        %v574 = vsel %vm496, %v556, 0.0
        %575 = vadd.xlane.f32.xlu0 %v574
        %v576 = vpop.xlane.xlu0 %575
        %v577 = vadd.f32 %v561, %v567
        %v578 = vadd.f32 %v562, %v570
        %v579 = vadd.f32 %v563, %v573
        %v580 = vadd.f32 %v564, %v576
        %vm581 = vcmask 7168
        %582 = vst.msk [vmem:[#allocation4] sm:$0xff] %vm581, %v577
        %583 = vst.msk [vmem:[#allocation4 + $0x8] sm:$0xff] %vm581, %v578
        %584 = vst.msk [vmem:[#allocation4 + $0x10] sm:$0xff] %vm581, %v579
        %585 = vst.msk [vmem:[#allocation4 + $0x18] sm:$0xff] %vm581, %v580
        %v587 = vsel %vm496, %v550, 0
        %v590 = vsel %vm496, %v552, 0
        %v593 = vsel %vm496, %v431, 0
        %595 = vmatpush.xpose.msra.mxu0 0.0
        %596 = vmatpush.xpose.msra.mxu0 0.0
        %597 = vmatpush.xpose.msra.mxu0 0.0
        %598 = vmatpush.xpose.msra.mxu0 0.0
        %599 = vmatpush.xpose.msra.mxu0 0.0
        %600 = vmatpush.xpose.msra.mxu0 0.0
        %601 = vmatpush.xpose.msra.mxu0 0.0
        %602 = vmatpush.xpose.msra.mxu0 0.0
        %603 = vmatpush.xpose.msra.mxu0 0.0
        %604 = vmatpush.xpose.msra.mxu0 0.0
        %605 = vmatpush.xpose.msra.mxu0 0.0
        %606 = vmatpush.xpose.msra.mxu0 0.0
        %607 = vmatpush.xpose.msra.mxu0 0.0
        %608 = vmatpush.xpose.msra.mxu0 0.0
        %609 = vmatpush.xpose.msra.mxu0 0.0
        %610 = vmatpush.xpose.msra.mxu0 %v593
        %611 = vmatmul.f32.gmra.mxu0 %v587
        %v612 = vpop.f32.mrf.mxu0
        %v613 = vadd.f32 0.0, %v612
        %614 = vmatmul.f32.gmra.mxu0 %v590
        %v615 = vpop.f32.mrf.mxu0
        %v616 = vadd.f32 0.0, %v615
        %617 = vdwg.mxu0
        %v619 = vsel %vm496, %v554, 0
        %v622 = vsel %vm496, %v556, 0
        %v625 = vsel %vm496, %v432, 0
        %627 = vmatpush.xpose.msra.mxu0 0.0
        %628 = vmatpush.xpose.msra.mxu0 0.0
        %629 = vmatpush.xpose.msra.mxu0 0.0
        %630 = vmatpush.xpose.msra.mxu0 0.0
        %631 = vmatpush.xpose.msra.mxu0 0.0
        %632 = vmatpush.xpose.msra.mxu0 0.0
        %633 = vmatpush.xpose.msra.mxu0 0.0
        %634 = vmatpush.xpose.msra.mxu0 0.0
        %635 = vmatpush.xpose.msra.mxu0 0.0
        %636 = vmatpush.xpose.msra.mxu0 0.0
        %637 = vmatpush.xpose.msra.mxu0 0.0
        %638 = vmatpush.xpose.msra.mxu0 0.0
        %639 = vmatpush.xpose.msra.mxu0 0.0
        %640 = vmatpush.xpose.msra.mxu0 0.0
        %641 = vmatpush.xpose.msra.mxu0 0.0
        %642 = vmatpush.xpose.msra.mxu0 %v625
        %643 = vmatmul.f32.gmra.mxu0 %v619
        %v644 = vpop.f32.mrf.mxu0
        %v645 = vadd.f32 0.0, %v644
        %646 = vmatmul.f32.gmra.mxu0 %v622
        %v647 = vpop.f32.mrf.mxu0
        %v648 = vadd.f32 0.0, %v647
        %649 = vdwg.mxu0
        %v650 = vld [vmem:[#allocation5] sm:$0xff]
        %v651 = vld [vmem:[#allocation5 + $0x8] sm:$0xff]
        %v652 = vld [vmem:[#allocation5 + $0x10] sm:$0xff]
        %v653 = vld [vmem:[#allocation5 + $0x18] sm:$0xff]
        %655 = vset.pattern.permute.xlu0 0
        %656 = vperm.xlu0 %655, %v518
        %v657 = vpop.permute.xlu0 %656
        %660 = vset.pattern.permute.xlu0 0
        %661 = vperm.xlu0 %660, %v520
        %v662 = vpop.permute.xlu0 %661
        %665 = vset.pattern.permute.xlu0 0
        %666 = vperm.xlu0 %665, %v522
        %v667 = vpop.permute.xlu0 %666
        %670 = vset.pattern.permute.xlu0 0
        %671 = vperm.xlu0 %670, %v524
        %v672 = vpop.permute.xlu0 %671
        %v674 = vmul.f32 %v657, %v650
        %v675 = vmul.f32 %v662, %v651
        %v676 = vmul.f32 %v667, %v652
        %v677 = vmul.f32 %v672, %v653
        %v678 = vadd.f32 %v674, %v613
        %v679 = vadd.f32 %v675, %v616
        %v680 = vadd.f32 %v676, %v645
        %v681 = vadd.f32 %v677, %v648
        %682 = vst.msk [vmem:[#allocation5] sm:$0xff] %vm433, %v678
        %683 = vst.msk [vmem:[#allocation5 + $0x8] sm:$0xff] %vm433, %v679
        %684 = vst.msk [vmem:[#allocation5 + $0x10] sm:$0xff] %vm433, %v680
        %685 = vst.msk [vmem:[#allocation5 + $0x18] sm:$0xff] %vm433, %v681
        %686 = vst.msk [vmem:[#allocation3] sm:$0xff] %vm581, %v509
        %687 = vst.msk [vmem:[#allocation3 + $0x8] sm:$0xff] %vm581, %v510
        %688 = vst.msk [vmem:[#allocation3 + $0x10] sm:$0xff] %vm581, %v511
        %689 = vst.msk [vmem:[#allocation3 + $0x18] sm:$0xff] %vm581, %v512
        // Predicated region
        $region37: #{tpu_custom_call.1} parent=31 // pred_check
          %p690 = pneg %p335
        $region38: #{tpu_custom_call.1} parent=31 // pred_check_branch
          %692 = sbr.rel (%p690) target = $region40
        $region39: #{tpu_custom_call.1} parent=31 // pred_region
          %v693 = vld [vmem:[#allocation4] sm:$0xff]
          %v694 = vld [vmem:[#allocation4 + $0x8] sm:$0xff]
          %v695 = vld [vmem:[#allocation4 + $0x10] sm:$0xff]
          %v696 = vld [vmem:[#allocation4 + $0x18] sm:$0xff]
          %v697 = vrcp.pop %v693
          %v698 = vrcp.pop %v694
          %v699 = vrcp.pop %v695
          %v700 = vrcp.pop %v696
          %v701 = vmul.f32 %v693, %v697
          %v702 = vmul.f32 %v694, %v698
          %v703 = vmul.f32 %v695, %v699
          %v704 = vmul.f32 %v696, %v700
          %v705 = vsub.f32 2.0, %v701
          %v706 = vsub.f32 2.0, %v702
          %v707 = vsub.f32 2.0, %v703
          %v708 = vsub.f32 2.0, %v704
          %v709 = vmul.f32 %v697, %v705
          %v710 = vmul.f32 %v698, %v706
          %v711 = vmul.f32 %v699, %v707
          %v712 = vmul.f32 %v700, %v708
          %v713 = vld [vmem:[#allocation5] sm:$0xff]
          %v714 = vld [vmem:[#allocation5 + $0x8] sm:$0xff]
          %v715 = vld [vmem:[#allocation5 + $0x10] sm:$0xff]
          %v716 = vld [vmem:[#allocation5 + $0x18] sm:$0xff]
          %718 = vset.pattern.permute.xlu0 0
          %719 = vperm.xlu0 %718, %v709
          %v720 = vpop.permute.xlu0 %719
          %723 = vset.pattern.permute.xlu0 0
          %724 = vperm.xlu0 %723, %v710
          %v725 = vpop.permute.xlu0 %724
          %728 = vset.pattern.permute.xlu0 0
          %729 = vperm.xlu0 %728, %v711
          %v730 = vpop.permute.xlu0 %729
          %733 = vset.pattern.permute.xlu0 0
          %734 = vperm.xlu0 %733, %v712
          %v735 = vpop.permute.xlu0 %734
          %v737 = vmul.f32 %v713, %v720
          %v738 = vmul.f32 %v714, %v725
          %v739 = vmul.f32 %v715, %v730
          %v740 = vmul.f32 %v716, %v735
          %741 = vxpose.xlu0.b32.start [1/16] %v737, 128
          %742 = vxpose.xlu0.b32.cont [2/16] %v738, 128
          %743 = vxpose.xlu0.b32.cont [3/16] 0.0, 128
          %744 = vxpose.xlu0.b32.cont [4/16] 0.0, 128
          %745 = vxpose.xlu0.b32.cont [5/16] 0.0, 128
          %746 = vxpose.xlu0.b32.cont [6/16] 0.0, 128
          %747 = vxpose.xlu0.b32.cont [7/16] 0.0, 128
          %748 = vxpose.xlu0.b32.cont [8/16] 0.0, 128
          %749 = vxpose.xlu0.b32.cont [9/16] 0.0, 128
          %750 = vxpose.xlu0.b32.cont [10/16] 0.0, 128
          %751 = vxpose.xlu0.b32.cont [11/16] 0.0, 128
          %752 = vxpose.xlu0.b32.cont [12/16] 0.0, 128
          %753 = vxpose.xlu0.b32.cont [13/16] 0.0, 128
          %754 = vxpose.xlu0.b32.cont [14/16] 0.0, 128
          %755 = vxpose.xlu0.b32.cont [15/16] 0.0, 128
          %756 = vxpose.xlu0.b32.end [16/16] 0.0, 128
          %v757 = vpop.trf.xlu0
          %v758 = vpop.trf.xlu0
          %v759 = vpop.trf.xlu0
          %v760 = vpop.trf.xlu0
          %v761 = vpop.trf.xlu0
          %v762 = vpop.trf.xlu0
          %v763 = vpop.trf.xlu0
          %v764 = vpop.trf.xlu0
          %v765 = vpop.trf.xlu0
          %v766 = vpop.trf.xlu0
          %v767 = vpop.trf.xlu0
          %v768 = vpop.trf.xlu0
          %v769 = vpop.trf.xlu0
          %v770 = vpop.trf.xlu0
          %v771 = vpop.trf.xlu0
          %v772 = vpop.trf.xlu0
          %773 = vxpose.xlu0.b32.start [1/16] %v739, 128
          %774 = vxpose.xlu0.b32.cont [2/16] %v740, 128
          %775 = vxpose.xlu0.b32.cont [3/16] 0.0, 128
          %776 = vxpose.xlu0.b32.cont [4/16] 0.0, 128
          %777 = vxpose.xlu0.b32.cont [5/16] 0.0, 128
          %778 = vxpose.xlu0.b32.cont [6/16] 0.0, 128
          %779 = vxpose.xlu0.b32.cont [7/16] 0.0, 128
          %780 = vxpose.xlu0.b32.cont [8/16] 0.0, 128
          %781 = vxpose.xlu0.b32.cont [9/16] 0.0, 128
          %782 = vxpose.xlu0.b32.cont [10/16] 0.0, 128
          %783 = vxpose.xlu0.b32.cont [11/16] 0.0, 128
          %784 = vxpose.xlu0.b32.cont [12/16] 0.0, 128
          %785 = vxpose.xlu0.b32.cont [13/16] 0.0, 128
          %786 = vxpose.xlu0.b32.cont [14/16] 0.0, 128
          %787 = vxpose.xlu0.b32.cont [15/16] 0.0, 128
          %788 = vxpose.xlu0.b32.end [16/16] 0.0, 128
          %v789 = vpop.trf.xlu0
          %v790 = vpop.trf.xlu0
          %v791 = vpop.trf.xlu0
          %v792 = vpop.trf.xlu0
          %v793 = vpop.trf.xlu0
          %v794 = vpop.trf.xlu0
          %v795 = vpop.trf.xlu0
          %v796 = vpop.trf.xlu0
          %v797 = vpop.trf.xlu0
          %v798 = vpop.trf.xlu0
          %v799 = vpop.trf.xlu0
          %v800 = vpop.trf.xlu0
          %v801 = vpop.trf.xlu0
          %v802 = vpop.trf.xlu0
          %v803 = vpop.trf.xlu0
          %v804 = vpop.trf.xlu0
          %805 = vst.msk [vmem:[%s290] sm:$0xff] %vm496, %v757
          %806 = vst.msk [vmem:[%s290 + $0x8] sm:$0xff] %vm496, %v789
        $region40: #{tpu_custom_call.1} parent=31 // pred_fallthru
          _
        %s807 = sand.u32 %s149, 1
        %s808 = scalar_lea.sflag [#allocation7], %s807
        %s809 = sand.u32 %s149, 1
        %s810 = smul.addr %s809, 16
        %s811 = scalar_lea.vmem [#allocation6], %s810
        // Predicated region
        $region41: #{tpu_custom_call.1} parent=31 // pred_check
          %p812 = pneg %p159
        $region42: #{tpu_custom_call.1} parent=31 // pred_check_branch
          %814 = sbr.rel (%p812) target = $region44
        $region43: #{tpu_custom_call.1} parent=31 // pred_region
          %s815 = smul.u32 2, %s24
          %817 = vsyncadd %s808, 0
          %s818 = sadd.s32 %s25, %s815
          %s819 = smul.addr %s23, 2
          %s820 = sadd.s32 %s818, %s819
          %s821 = smul.addr %s820, 8
          %s822 = scalar_lea.hbm %s3, %s821
          %s823 = sshll.u32 %s811, 4
          %s824 = int_to_ptr.vmem [resolvable:$true] %s823
          %s825 = sshll.u32 %s822, 4
          %s826 = int_to_ptr.hbm [resolvable:$true] %s825
          %831 = dma.vmem_to_hbm [thread:$0]  %s824, 256, %s826, %s808, 128, 128, 8
        $region44: #{tpu_custom_call.1} parent=31 // pred_fallthru
          _
      $region32: #{tpu_custom_call.1} parent=5 // pred_fallthru
        _
      %p832 = scmp.le.s32.totalorder 2, %s12
      // Predicated region
      $region45: #{tpu_custom_call.1} parent=5 // pred_check
        %p833 = pneg %p832
      $region46: #{tpu_custom_call.1} parent=5 // pred_check_branch
        %835 = sbr.rel (%p833) target = $region48
      $region47: #{tpu_custom_call.1} parent=5 // pred_region
        %s836 = ssub.s32 %s12, 2
        // Predicated region
        $region49: #{tpu_custom_call.1} parent=47 // pred_check
          %p837 = pneg %p165
        $region50: #{tpu_custom_call.1} parent=47 // pred_check_branch
          %839 = sbr.rel (%p837) target = $region52
        $region51: #{tpu_custom_call.1} parent=47 // pred_region
          %s840 = sand.u32 %s150, 1
          %s841 = scalar_lea.sflag [#allocation7], %s840
          %s842 = sand.u32 %s150, 1
          %s843 = smul.addr %s842, 16
          %s844 = scalar_lea.vmem [#allocation6], %s843
          %846 = dma.done %s841, 256
        $region52: #{tpu_custom_call.1} parent=47 // pred_fallthru
          _
      $region48: #{tpu_custom_call.1} parent=5 // pred_fallthru
        _
    $region6: #{tpu_custom_call.1} parent=1 // loop_footer
      %s16 = sadd.s32 1, %s12
    $region7: #{tpu_custom_call.1} parent=1 // loop_footer_branch
      %11 = sbr.rel target = $region3
    $region8: #{tpu_custom_call.1} parent=1 // loop_exit
      _
    %847 = vsyncpa [#allocation7], 1
    %s848 = scalar_lea.sflag [#allocation7], 1
    %849 = vsyncpa %s848, 1

</llo_original>
